<compile_context>
chip_gen: v6e
topology: v6e:2x2x1
jax: 0.10.0
libtpu: 0.0.40
codegen_flags: <defaults>
</compile_context>

<pallas_src>
import functools

import jax
import jax.numpy as jnp
from jax.experimental import pallas as pl
from jax.experimental.pallas import tpu as pltpu


def _round_up(x, m):
    return ((x + m - 1) // m) * m


# -----------------------------------------------------------------------------
# K == 1 fast path: kernel_size=1 conv is a pure (B*T, C_in) @ (C_in, C_out_p)
# matmul.  Batch and time are folded into the MXU M dimension.
# -----------------------------------------------------------------------------
def _pointwise_kernel(x_ref, w_ref, b_ref, o_ref):
    # x_ref: (tm, C_in)  w_ref: (C_in, C_out_p)  b_ref: (1, C_out_p)
    acc = jnp.dot(x_ref[...], w_ref[...], preferred_element_type=jnp.float32)
    o_ref[...] = (acc + b_ref[...].astype(jnp.float32)).astype(o_ref.dtype)


# -----------------------------------------------------------------------------
# K > 1 path: fold the K taps into the contraction dim -> one wide matmul.
# The whole padded time axis of one batch element stays resident in VMEM while
# the output time axis is tiled.
# -----------------------------------------------------------------------------
def _folded_kernel(x_ref, w_ref, b_ref, o_ref, *, ksize, t_tile):
    # x_ref: (1, T_pad_r, C_in)  w_ref: (K*C_in, C_out_p)  o_ref: (1, t_tile, C_out_p)
    t = pl.program_id(1)
    start = t * t_tile
    if t_tile % 8 == 0:
        start = pl.multiple_of(start, 8)
    taps = [x_ref[0, pl.ds(start + k, t_tile), :] for k in range(ksize)]
    slab = jnp.concatenate(taps, axis=-1)                 # (t_tile, K*C_in)
    acc = jnp.dot(slab, w_ref[...], preferred_element_type=jnp.float32)
    o_ref[0] = (acc + b_ref[...].astype(jnp.float32)).astype(o_ref.dtype)


def conv_forward(x, weight, bias=None, *, stride=1, padding=0, dilation=1,
                 t_tile=256, compute_dtype=None):
    """Pallas implementation of Conv.forward.

    x:      (B, T, C_in)
    weight: (C_out, C_in, K)   torch Conv1d weight layout
    bias:   (C_out,) or None
    returns (B, T_out, C_out)
    """
    # TODO(synk): stride > 1 / dilation > 1 not expressed in-kernel (module defaults are 1).
    assert stride == 1 and dilation == 1, "only stride=1, dilation=1 supported"
    assert t_tile % 8 == 0

    B, T, C_in = x.shape
    C_out, C_in_w, K = weight.shape
    assert C_in_w == C_in
    T_pad = T + 2 * padding
    T_out = T_pad - (K - 1)
    assert T_out > 0, "kernel larger than padded input"

    out_dtype = x.dtype
    if compute_dtype is None:
        compute_dtype = x.dtype
    if bias is None:
        bias = jnp.zeros((C_out,), jnp.float32)

    # Lane-dense output channels: pad C_out up to a multiple of 128 so output
    # stores are full vst (not masked partial stores); slice back afterwards.
    C_out_p = _round_up(C_out, 128)
    b_row = jnp.pad(bias.astype(jnp.float32), (0, C_out_p - C_out)).reshape(1, C_out_p)

    vmem_bytes = 32 * 1024 * 1024
    out_isize = jnp.dtype(out_dtype).itemsize

    if K == 1:
        # ----- pointwise path: flatten (B, T) -> M, tile M ------------------
        x_pad = x if padding == 0 else jnp.pad(x, ((0, 0), (padding, padding), (0, 0)))
        M = B * T_pad
        x_mat = x_pad.reshape(M, C_in).astype(compute_dtype)
        w_mat = jnp.pad(weight[:, :, 0].T.astype(compute_dtype),
                        ((0, 0), (0, C_out_p - C_out)))
        tm = M if M <= t_tile else t_tile
        grid = (pl.cdiv(M, tm),)

        out = pl.pallas_call(
            _pointwise_kernel,
            out_shape=jax.ShapeDtypeStruct((M, C_out_p), out_dtype),
            grid_spec=pltpu.PrefetchScalarGridSpec(
                num_scalar_prefetch=0,
                grid=grid,
                in_specs=[
                    pl.BlockSpec((tm, C_in), lambda i: (i, 0)),
                    pl.BlockSpec((C_in, C_out_p), lambda i: (0, 0)),
                    pl.BlockSpec((1, C_out_p), lambda i: (0, 0)),
                ],
                out_specs=pl.BlockSpec((tm, C_out_p), lambda i: (i, 0)),
            ),
            compiler_params=pltpu.CompilerParams(
                dimension_semantics=("parallel",),
                vmem_limit_bytes=vmem_bytes),
            cost_estimate=pl.CostEstimate(
                flops=2 * M * C_in * C_out_p,
                transcendentals=0,
                bytes_accessed=(x_mat.size * x_mat.dtype.itemsize
                                + w_mat.size * w_mat.dtype.itemsize
                                + b_row.size * 4
                                + M * C_out_p * out_isize)),
        )(x_mat, w_mat, b_row)
        out = out.reshape(B, T_pad, C_out_p)            # T_out == T_pad for K == 1
    else:
        # ----- general small-K path: fold taps into the contraction dim -----
        # TODO(synk): overlapping time-tile halos cannot be expressed with
        # BlockSpec; for very long T this keeps the whole padded time axis of
        # one batch element in VMEM (manual halo DMA would be needed instead).
        tt = T_out if T_out <= t_tile else t_tile
        n_t = pl.cdiv(T_out, tt)
        T_out_p = n_t * tt
        T_pad_r = T_out_p + (K - 1)                     # >= T + 2*padding
        x_pad = jnp.pad(x, ((0, 0), (padding, T_pad_r - T - padding), (0, 0)))
        x_pad = x_pad.astype(compute_dtype)
        w_fold = jnp.transpose(weight, (2, 1, 0)).reshape(K * C_in, C_out)
        w_fold = jnp.pad(w_fold.astype(compute_dtype), ((0, 0), (0, C_out_p - C_out)))

        kernel = functools.partial(_folded_kernel, ksize=K, t_tile=tt)
        out = pl.pallas_call(
            kernel,
            out_shape=jax.ShapeDtypeStruct((B, T_out_p, C_out_p), out_dtype),
            grid_spec=pltpu.PrefetchScalarGridSpec(
                num_scalar_prefetch=0,
                grid=(B, n_t),
                in_specs=[
                    pl.BlockSpec((1, T_pad_r, C_in), lambda b, t: (b, 0, 0)),
                    pl.BlockSpec((K * C_in, C_out_p), lambda b, t: (0, 0)),
                    pl.BlockSpec((1, C_out_p), lambda b, t: (0, 0)),
                ],
                out_specs=pl.BlockSpec((1, tt, C_out_p), lambda b, t: (b, t, 0)),
            ),
            compiler_params=pltpu.CompilerParams(
                dimension_semantics=("parallel", "parallel"),
                vmem_limit_bytes=vmem_bytes),
            cost_estimate=pl.CostEstimate(
                flops=2 * B * T_out_p * K * C_in * C_out_p,
                transcendentals=0,
                bytes_accessed=(x_pad.size * x_pad.dtype.itemsize
                                + w_fold.size * w_fold.dtype.itemsize
                                + b_row.size * 4
                                + B * T_out_p * C_out_p * out_isize)),
        )(x_pad, w_fold, b_row)
        out = out[:, :T_out, :]

    if C_out_p != C_out:
        out = out[..., :C_out]
    return out


def _reference(x, weight, bias, padding):
    """Plain-JAX reference matching torch.nn.Conv1d on transposed input."""
    x_pad = jnp.pad(x, ((0, 0), (padding, padding), (0, 0)))
    K = weight.shape[2]
    T_out = x_pad.shape[1] - (K - 1)
    out = jnp.zeros((x.shape[0], T_out, weight.shape[0]), jnp.float32)
    for k in range(K):
        out = out + jnp.einsum("btc,oc->bto",
                               x_pad[:, k:k + T_out, :], weight[:, :, k])
    return out + bias[None, None, :]


if __name__ == "__main__":
    key = jax.random.PRNGKey(0)
    kx, kw, kb, kx2, kw2, kb2 = jax.random.split(key, 6)

    # --- Case 1: module config Conv(32, 64) with defaults (K=1, pad=0) ------
    B, T, C_in, C_out, K, PAD = 2, 8, 32, 64, 1, 0
    x = jax.random.normal(kx, (B, T, C_in), jnp.float32)
    limit = (6.0 / (C_in * K + C_out * K)) ** 0.5        # xavier-uniform, gain=1
    weight = jax.random.uniform(kw, (C_out, C_in, K), jnp.float32, -limit, limit)
    bias = jax.random.uniform(kb, (C_out,), jnp.float32, -0.1, 0.1)

    out = jax.block_until_ready(conv_forward(x, weight, bias, padding=PAD))
    ref = _reference(x, weight, bias, PAD)
    assert out.shape == (B, T, C_out), out.shape
    assert jnp.allclose(out, ref, atol=1e-5, rtol=1e-5), "K=1 mismatch vs reference"

    # --- Case 2: K=3, padding=1 (exercises the folded-tap path) -------------
    K2, PAD2 = 3, 1
    x2 = jax.random.normal(kx2, (B, T, C_in), jnp.float32)
    limit2 = (6.0 / (C_in * K2 + C_out * K2)) ** 0.5
    weight2 = jax.random.uniform(kw2, (C_out, C_in, K2), jnp.float32, -limit2, limit2)
    bias2 = jax.random.uniform(kb2, (C_out,), jnp.float32, -0.1, 0.1)

    out2 = jax.block_until_ready(conv_forward(x2, weight2, bias2, padding=PAD2))
    ref2 = _reference(x2, weight2, bias2, PAD2)
    assert out2.shape == (B, T + 2 * PAD2 - (K2 - 1), C_out), out2.shape
    assert jnp.allclose(out2, ref2, atol=1e-5, rtol=1e-5), "K=3 mismatch vs reference"

    print("KERNEL_OK")
</pallas_src>

<mosaic_0001>
module attributes {stable_mosaic.version = 11 : i64} {
  func.func @_pointwise_kernel(%arg0: i32, %arg1: memref<16x32xf32, #tpu.memory_space<vmem>>, %arg2: memref<32x128xf32, #tpu.memory_space<vmem>>, %arg3: memref<1x128xf32, #tpu.memory_space<vmem>>, %arg4: memref<16x128xf32, #tpu.memory_space<vmem>>) attributes {dimension_semantics = [#tpu.dimension_semantics<parallel>], iteration_bounds = array<i64: 1>, scalar_prefetch = 0 : i64, scratch_operands = 0 : i64, tpu.core_type = #tpu.core_type<tc>, window_params = [{transform_indices = @transform_0, window_bounds = array<i64: 16, 32>}, {pipeline_mode = #tpu.pipeline_mode<synchronous>, transform_indices = @transform_1, window_bounds = array<i64: 32, 128>}, {pipeline_mode = #tpu.pipeline_mode<synchronous>, transform_indices = @transform_2, window_bounds = array<i64: 1, 128>}, {transform_indices = @transform_3, window_bounds = array<i64: 16, 128>}]} {
    %c0 = arith.constant 0 : index
    %c0_0 = arith.constant 0 : index
    %0 = vector.load %arg1[%c0, %c0_0] : memref<16x32xf32, #tpu.memory_space<vmem>>, vector<16x32xf32>
    %c0_1 = arith.constant 0 : index
    %c0_2 = arith.constant 0 : index
    %1 = vector.load %arg2[%c0_1, %c0_2] : memref<32x128xf32, #tpu.memory_space<vmem>>, vector<32x128xf32>
    %cst = arith.constant dense<0.000000e+00> : vector<16x128xf32>
    %2 = tpu.matmul %0, %1, %cst {dimension_numbers = #tpu.dot_dimension_numbers<[1], [0], [0], [1], [0, 0, 1, 1], [], []>} : vector<16x32xf32>, vector<32x128xf32>, vector<16x128xf32> -> vector<16x128xf32>
    %c0_3 = arith.constant 0 : index
    %c0_4 = arith.constant 0 : index
    %3 = vector.load %arg3[%c0_3, %c0_4] : memref<1x128xf32, #tpu.memory_space<vmem>>, vector<1x128xf32>
    %4 = vector.broadcast %3 : vector<1x128xf32> to vector<16x128xf32>
    %5 = arith.addf %2, %4 : vector<16x128xf32>
    %c0_5 = arith.constant 0 : index
    %c0_6 = arith.constant 0 : index
    %6 = vector.load %arg4[%c0_5, %c0_6] : memref<16x128xf32, #tpu.memory_space<vmem>>, vector<16x128xf32>
    tpu.vector_store %arg4[%c0_5, %c0_6], %5 {strides = array<i32>} : memref<16x128xf32, #tpu.memory_space<vmem>>, vector<16x128xf32>,
    return
  }
  func.func @transform_0(%arg0: i32) -> (i32, i32) {
    %c0_i32 = arith.constant 0 : i32
    %c0_i32_0 = arith.constant 0 : i32
    return %arg0, %c0_i32 : i32, i32
  }
  func.func @transform_1(%arg0: i32) -> (i32, i32) {
    %c0_i32 = arith.constant 0 : i32
    %c0_i32_0 = arith.constant 0 : i32
    %c0_i32_1 = arith.constant 0 : i32
    return %c0_i32, %c0_i32_0 : i32, i32
  }
  func.func @transform_2(%arg0: i32) -> (i32, i32) {
    %c0_i32 = arith.constant 0 : i32
    %c0_i32_0 = arith.constant 0 : i32
    %c0_i32_1 = arith.constant 0 : i32
    return %c0_i32, %c0_i32_0 : i32, i32
  }
  func.func @transform_3(%arg0: i32) -> (i32, i32) {
    %c0_i32 = arith.constant 0 : i32
    %c0_i32_0 = arith.constant 0 : i32
    return %arg0, %c0_i32 : i32, i32
  }
}

</mosaic_0001>

<llo_original>
// kernel: tpu_custom_call.1
$region0: #{tpu_custom_call.1}
  #allocation0 [shape = 'u32[]', space=smem, size = 0x4, offset = 0x4, fixed_abs, tag = 'smem constant byte address 0x4 - core index']
  #allocation1 [shape = 'u32[144,128]{1,0:T(1,128)}', space=vmem, size = 0x12000, scoped, tag = 'internal scratch']
  %s0 = inlined_call_operand.hbm [shape: f32[16,32], index: 0, kind: input, shape index: {}]
  %s1 = inlined_call_operand.hbm [shape: f32[32,128], index: 1, kind: input, shape index: {}]
  %s2 = inlined_call_operand.vmem [shape: f32[1,128], index: 2, kind: input, shape index: {}]
  %s3 = inlined_call_operand.hbm [shape: f32[16,128], index: 3, kind: output, shape index: {}]
  %s4 = sld [smem:[#allocation0]]
  $region30: #{tpu_custom_call.1} parent=0
    _
  %s6 = ssub.s32 1, %s4
  %s7 = scalar_select 0, %s6, %s4
  $region1: #{tpu_custom_call.1} parent=0
    #allocation2 [shape = 'u8[8192]{0}', space=vmem, size = 0x2000, scoped, tag = 'input window, operand 0, single buffered']
    #allocation3 [shape = 's32[1]{0}', space=sflag, size = 0x4, scoped, tag = 'scoped memory for tpu_custom_call.1']
    #allocation4 [shape = 's32[1]{0}', space=sflag, size = 0x4, scoped, tag = 'scoped memory for tpu_custom_call.1']
    #allocation5 [shape = 'u8[16384]{0}', space=vmem, size = 0x4000, scoped, tag = 'input window, operand 1, single buffered']
    #allocation6 [shape = 's32[1]{0}', space=sflag, size = 0x4, scoped, tag = 'scoped memory for tpu_custom_call.1']
    #allocation7 [shape = 'u8[8192]{0}', space=vmem, size = 0x2000, scoped, tag = 'output window, operand 0, single buffered']
    %8 = vsyncpa [#allocation3], 0
    %9 = vsyncpa [#allocation6], 0
    %10 = vsyncpa [#allocation4], 0
    // Predicated region
    $region2: #{tpu_custom_call.1} parent=1 // pred_check
      _
    $region3: #{tpu_custom_call.1} parent=1 // pred_check_branch
      %12 = sbr.rel (0) target = $region5
    $region4: #{tpu_custom_call.1} parent=1 // pred_region
      %s14 = ssub.s32 256, 256
      %15 = vsyncadd [#allocation3], %s14
      %s16 = sshll.u32 [#allocation2], 4
      %s17 = int_to_ptr.vmem [resolvable:$true] %s16
      %22 = dma.hbm_to_vmem [thread:$0]  %s0, 256, %s17, [#allocation3], 128, 128, 8
    $region5: #{tpu_custom_call.1} parent=1 // pred_fallthru
      _
    // Predicated region
    $region6: #{tpu_custom_call.1} parent=1 // pred_check
      _
    $region7: #{tpu_custom_call.1} parent=1 // pred_check_branch
      %24 = sbr.rel (0) target = $region9
    $region8: #{tpu_custom_call.1} parent=1 // pred_region
      %s26 = ssub.s32 512, 512
      %27 = vsyncadd [#allocation6], %s26
      %s28 = sshll.u32 [#allocation5], 4
      %s29 = int_to_ptr.vmem [resolvable:$true] %s28
      %34 = dma.hbm_to_vmem [thread:$0]  %s1, 512, %s29, [#allocation6], 128, 128, 8
    $region9: #{tpu_custom_call.1} parent=1 // pred_fallthru
      _
    // Predicated region
    $region10: #{tpu_custom_call.1} parent=1 // pred_check
      _
    $region11: #{tpu_custom_call.1} parent=1 // pred_check_branch
      %36 = sbr.rel (0) target = $region13
    $region12: #{tpu_custom_call.1} parent=1 // pred_region
      _
    $region13: #{tpu_custom_call.1} parent=1 // pred_fallthru
      _
    // Predicated region
    $region14: #{tpu_custom_call.1} parent=1 // pred_check
      _
    $region15: #{tpu_custom_call.1} parent=1 // pred_check_branch
      %38 = sbr.rel (0) target = $region17
    $region16: #{tpu_custom_call.1} parent=1 // pred_region
      %39 = dma.done [#allocation3], 256
    $region17: #{tpu_custom_call.1} parent=1 // pred_fallthru
      _
    // Predicated region
    $region18: #{tpu_custom_call.1} parent=1 // pred_check
      _
    $region19: #{tpu_custom_call.1} parent=1 // pred_check_branch
      %41 = sbr.rel (0) target = $region21
    $region20: #{tpu_custom_call.1} parent=1 // pred_region
      %42 = dma.done [#allocation6], 512
    $region21: #{tpu_custom_call.1} parent=1 // pred_fallthru
      _
    %v43 = vld [vmem:[#allocation2] sm:$0xff]
    %v44 = vld [vmem:[#allocation2 + $0x8] sm:$0xff]
    %v45 = vld [vmem:[#allocation5] sm:$0xff]
    %v46 = vld [vmem:[#allocation5 + $0x8] sm:$0xff]
    %v47 = vld [vmem:[#allocation5 + $0x10] sm:$0xff]
    %v48 = vld [vmem:[#allocation5 + $0x18] sm:$0xff]
    %v49 = vld [vmem:[%s2] sm:$0x1]
    %v51 = vlaneseq
    %v52 = vshrl.u32 %v51, 7
    %v53 = vsub.s32 0, %v52
    %v54 = vrot.slane %v49, %v53
    %vm56 = vcmask 261120
    %v58 = vsel %vm56, %v43, 0
    %v61 = vsel %vm56, %v44, 0
    %63 = vmatprep.subr.mxu0 0.0
    %64 = vmatpush1.msra.mxu0 0.0
    %65 = vmatprep.subr.mxu0 0.0
    %66 = vmatpush1.msra.mxu0 0.0
    %67 = vmatprep.subr.mxu0 0.0
    %68 = vmatpush1.msra.mxu0 0.0
    %69 = vmatprep.subr.mxu0 0.0
    %70 = vmatpush1.msra.mxu0 0.0
    %71 = vmatprep.subr.mxu0 0.0
    %72 = vmatpush1.msra.mxu0 0.0
    %73 = vmatprep.subr.mxu0 0.0
    %74 = vmatpush1.msra.mxu0 0.0
    %75 = vmatprep.subr.mxu0 0.0
    %76 = vmatpush1.msra.mxu0 0.0
    %77 = vmatprep.subr.mxu0 0.0
    %78 = vmatpush1.msra.mxu0 0.0
    %79 = vmatprep.subr.mxu0 0.0
    %80 = vmatpush1.msra.mxu0 0.0
    %81 = vmatprep.subr.mxu0 0.0
    %82 = vmatpush1.msra.mxu0 0.0
    %83 = vmatprep.subr.mxu0 0.0
    %84 = vmatpush1.msra.mxu0 0.0
    %85 = vmatprep.subr.mxu0 0.0
    %86 = vmatpush1.msra.mxu0 0.0
    %87 = vmatprep.subr.mxu0 0.0
    %88 = vmatpush1.msra.mxu0 %v48
    %89 = vmatprep.subr.mxu0 0.0
    %90 = vmatpush1.msra.mxu0 %v47
    %91 = vmatprep.subr.mxu0 0.0
    %92 = vmatpush1.msra.mxu0 %v46
    %93 = vmatprep.subr.mxu0 0.0
    %94 = vmatpush1.msra.mxu0 %v45
    %95 = vmatprep.subr.mxu0 0.0
    %96 = vmatpush2.msra.mxu0 0.0
    %97 = vmatprep.subr.mxu0 0.0
    %98 = vmatpush2.msra.mxu0 0.0
    %99 = vmatprep.subr.mxu0 0.0
    %100 = vmatpush2.msra.mxu0 0.0
    %101 = vmatprep.subr.mxu0 0.0
    %102 = vmatpush2.msra.mxu0 0.0
    %103 = vmatprep.subr.mxu0 0.0
    %104 = vmatpush2.msra.mxu0 0.0
    %105 = vmatprep.subr.mxu0 0.0
    %106 = vmatpush2.msra.mxu0 0.0
    %107 = vmatprep.subr.mxu0 0.0
    %108 = vmatpush2.msra.mxu0 0.0
    %109 = vmatprep.subr.mxu0 0.0
    %110 = vmatpush2.msra.mxu0 0.0
    %111 = vmatprep.subr.mxu0 0.0
    %112 = vmatpush2.msra.mxu0 0.0
    %113 = vmatprep.subr.mxu0 0.0
    %114 = vmatpush2.msra.mxu0 0.0
    %115 = vmatprep.subr.mxu0 0.0
    %116 = vmatpush2.msra.mxu0 0.0
    %117 = vmatprep.subr.mxu0 0.0
    %118 = vmatpush2.msra.mxu0 0.0
    %119 = vmatprep.subr.mxu0 0.0
    %120 = vmatpush2.msra.mxu0 0.0
    %121 = vmatprep.subr.mxu0 0.0
    %122 = vmatpush2.msra.mxu0 0.0
    %123 = vmatprep.subr.mxu0 0.0
    %124 = vmatpush2.msra.mxu0 0.0
    %125 = vmatprep.subr.mxu0 0.0
    %126 = vmatpush2.msra.mxu0 0.0
    %127 = vmatprep.mubr.f32.mxu0 0.0
    %128 = vmatmul.mubr.f32.gmra.mxu0 %v58
    %v129 = vpop.f32.mrf.mxu0
    %v130 = vadd.f32 %v54, %v129
    %v131 = vpop.f32.mrf.mxu0
    %132 = vmatprep.mubr.f32.mxu0 0.0
    %133 = vmatmul.mubr.f32.gmra.mxu0 %v61
    %v134 = vpop.f32.mrf.mxu0
    %v135 = vadd.f32 %v54, %v134
    %v136 = vpop.f32.mrf.mxu0
    %137 = vdwg.mxu0
    %138 = vst [vmem:[#allocation7] sm:$0xff] %v130
    %139 = vst [vmem:[#allocation7 + $0x8] sm:$0xff] %v135
    // Predicated region
    $region22: #{tpu_custom_call.1} parent=1 // pred_check
      _
    $region23: #{tpu_custom_call.1} parent=1 // pred_check_branch
      %141 = sbr.rel (0) target = $region25
    $region24: #{tpu_custom_call.1} parent=1 // pred_region
      %s143 = ssub.s32 256, 256
      %144 = vsyncadd [#allocation4], %s143
      %s145 = sshll.u32 [#allocation7], 4
      %s146 = int_to_ptr.vmem [resolvable:$true] %s145
      %151 = dma.vmem_to_hbm [thread:$0]  %s146, 256, %s3, [#allocation4], 128, 128, 8
    $region25: #{tpu_custom_call.1} parent=1 // pred_fallthru
      _
    // Predicated region
    $region26: #{tpu_custom_call.1} parent=1 // pred_check
      _
    $region27: #{tpu_custom_call.1} parent=1 // pred_check_branch
      %153 = sbr.rel (0) target = $region29
    $region28: #{tpu_custom_call.1} parent=1 // pred_region
      %154 = dma.done [#allocation4], 256
    $region29: #{tpu_custom_call.1} parent=1 // pred_fallthru
      _
    %155 = vsyncpa [#allocation3], 1
    %156 = vsyncpa [#allocation6], 1
    %157 = vsyncpa [#allocation4], 1

</llo_original>
